<compile_context>
chip_gen: v6e
topology: v6e:2x2x1
jax: 0.10.0
libtpu: 0.0.40
codegen_flags: <defaults>
</compile_context>

<pallas_src>
import functools

import jax
import jax.numpy as jnp
import numpy as np
from jax import lax
from jax.experimental import pallas as pl
from jax.experimental.pallas import tpu as pltpu

EPS = 1e-5


def basic_block_kernel(x_ref, w1_ref, w2_ref, b1_ref, b2_ref, o_ref, *, width):
    """Fused conv3x3 -> BN -> ReLU -> conv3x3 -> BN -> +residual -> ReLU.

    x_ref : (B, C, P)   B images, channels x flattened pixels (f32)
    w*_ref: (C, 9*C)    BN-scale-folded conv weights, all 9 taps on K (bf16)
    b*_ref: (C, 1)      folded BN bias (f32)
    o_ref : (B, C, P)   output (f32)
    """
    B, C, P = x_ref.shape

    # Column masks, built once; shared by both convs and all B images.
    col = lax.broadcasted_iota(jnp.int32, (C, P), 1) % width
    not_col_first = col != 0            # source at col 0 is invalid for a dw=+1 read
    not_col_last = col != (width - 1)   # source at col W-1 is invalid for a dw=-1 read

    def shift(v, s):
        # result[:, p] = v[:, p + s], exact zero where p + s falls outside [0, P).
        if s > 0:
            return jnp.concatenate([v[:, s:], jnp.zeros((C, s), v.dtype)], axis=1)
        if s < 0:
            return jnp.concatenate([jnp.zeros((C, -s), v.dtype), v[:, :s]], axis=1)
        return v

    def taps(v):
        """(C, P) f32 -> (9C, P) bf16; block kh*3+kw holds tap (dh=kh-1, dw=kw-1).

        Horizontal halo via source-side masking: a dw=+1 read is invalid
        exactly when its source lands on column 0 (row wrap of the flat
        index), a dw=-1 read exactly when it lands on column W-1 -- so zeroing
        those source columns once covers all three kernel rows.  Vertical halo
        (dh = +-1 past the top/bottom edge) is covered by the zero fill in
        `shift` (each call operates on a single image's (C, P) slab).
        """
        variants = {
            -1: jnp.where(not_col_last, v, 0.0).astype(jnp.bfloat16),
            0: v.astype(jnp.bfloat16),
            1: jnp.where(not_col_first, v, 0.0).astype(jnp.bfloat16),
        }
        blocks = []
        for dh in (-1, 0, 1):
            for dw in (-1, 0, 1):
                blocks.append(shift(variants[dw], dh * width + dw))
        return jnp.concatenate(blocks, axis=0)                     # (9C, P) bf16

    # conv1 (+ folded BN1 scale) -> bias -> ReLU: one K=9C matmul for all B images.
    xs = [x_ref[b] for b in range(B)]                              # B x (C, P) f32
    a1 = jnp.concatenate([taps(x) for x in xs], axis=1)            # (9C, B*P) bf16
    out1 = jnp.dot(w1_ref[...], a1, preferred_element_type=jnp.float32)
    out1 = jnp.maximum(out1 + b1_ref[...], 0.0)                    # (C, B*P) f32

    # conv2 (+ folded BN2 scale) -> bias -> +residual -> ReLU.
    a2 = jnp.concatenate(
        [taps(out1[:, b * P:(b + 1) * P]) for b in range(B)], axis=1)
    out2 = jnp.dot(w2_ref[...], a2, preferred_element_type=jnp.float32)
    out2 = out2 + b2_ref[...]
    for b in range(B):
        o_ref[b] = jnp.maximum(out2[:, b * P:(b + 1) * P] + xs[b],
                               0.0).astype(o_ref.dtype)


def fold_bn(gamma, beta, mean, var):
    scale = gamma / jnp.sqrt(var + EPS)
    bias = beta - mean * scale
    return scale, bias                                             # (C,), (C,)


def fold_weight(w_hwio, scale):
    """(3,3,Cin,Cout) HWIO weight * per-Cout BN scale -> (Cout, 9*Cin) bf16.

    wk[co, (kh*3 + kw)*Cin + ci] = w[kh, kw, ci, co] * scale[co]
    (scale folded BEFORE the bf16 cast; the reference does the same).
    """
    kh, kw, cin, cout = w_hwio.shape
    wf = w_hwio * scale[None, None, None, :]
    wk = jnp.transpose(wf, (3, 0, 1, 2)).reshape(cout, kh * kw * cin)
    return wk.astype(jnp.bfloat16)


@functools.partial(jax.jit, static_argnames=("batch_tile",))
def basic_block_forward(x_nchw, w1, bn1, w2, bn2, *, batch_tile=1):
    """x_nchw: (N, C, H, W). w*: (3, 3, Cin, Cout) HWIO. bn*: (g, b, mean, var)."""
    n, c, h, w = x_nchw.shape
    p = h * w
    assert n % batch_tile == 0
    xf = x_nchw.reshape(n, c, p)          # free view: NCHW is channel-major

    s1, b1 = fold_bn(*bn1)
    s2, b2 = fold_bn(*bn2)
    w1k = fold_weight(w1, s1)
    w2k = fold_weight(w2, s2)
    b1 = b1.reshape(c, 1).astype(jnp.float32)
    b2 = b2.reshape(c, 1).astype(jnp.float32)

    out = pl.pallas_call(
        functools.partial(basic_block_kernel, width=w),
        out_shape=jax.ShapeDtypeStruct((n, c, p), x_nchw.dtype),
        grid=(n // batch_tile,),
        in_specs=[
            pl.BlockSpec((batch_tile, c, p), lambda i: (i, 0, 0)),
            pl.BlockSpec((c, 9 * c), lambda i: (0, 0)),
            pl.BlockSpec((c, 9 * c), lambda i: (0, 0)),
            pl.BlockSpec((c, 1), lambda i: (0, 0)),
            pl.BlockSpec((c, 1), lambda i: (0, 0)),
        ],
        out_specs=pl.BlockSpec((batch_tile, c, p), lambda i: (i, 0, 0)),
        compiler_params=pltpu.CompilerParams(
            dimension_semantics=("parallel",)),   # megacore split on v7x
    )(xf, w1k, w2k, b1, b2)

    return out.reshape(n, c, h, w)


def reference_forward(x_nchw, w1, bn1, w2, bn2):
    """Pure-XLA reference with the same BN-scale fold and bf16 quantization."""
    q = lambda t: t.astype(jnp.bfloat16).astype(jnp.float32)
    s1, b1 = fold_bn(*bn1)
    s2, b2 = fold_bn(*bn2)
    w1f = q(w1 * s1[None, None, None, :])
    w2f = q(w2 * s2[None, None, None, :])
    x = jnp.transpose(x_nchw, (0, 2, 3, 1)).astype(jnp.float32)    # NHWC
    dn = ('NHWC', 'HWIO', 'NHWC')
    o = lax.conv_general_dilated(q(x), w1f, (1, 1), 'SAME', dimension_numbers=dn)
    o = jnp.maximum(o + b1.reshape(1, 1, 1, -1), 0.0)
    o = lax.conv_general_dilated(q(o), w2f, (1, 1), 'SAME', dimension_numbers=dn)
    o = o + b2.reshape(1, 1, 1, -1)
    o = jnp.maximum(o + x, 0.0)
    return jnp.transpose(o, (0, 3, 1, 2))


if __name__ == "__main__":
    # BasicBlock(inplanes=32, planes=32, stride=1, downsample=None)
    N, C, H, W = 2, 32, 16, 16

    key = jax.random.PRNGKey(0)
    k = jax.random.split(key, 8)
    x = jax.random.normal(k[0], (N, C, H, W), jnp.float32)

    # conv weights in HWIO (3, 3, Cin, Cout)
    w1 = jax.random.normal(k[1], (3, 3, C, C), jnp.float32) * 0.1
    w2 = jax.random.normal(k[2], (3, 3, C, C), jnp.float32) * 0.1

    # BatchNorm eval-mode params (gamma, beta, running_mean, running_var)
    bn1 = (jnp.abs(jax.random.normal(k[3], (C,))) + 0.5,
           jax.random.normal(k[4], (C,)) * 0.1,
           jax.random.normal(k[5], (C,)) * 0.1,
           jnp.abs(jax.random.normal(k[6], (C,))) + 0.5)
    bn2 = (jnp.ones((C,)), jnp.zeros((C,)),
           jax.random.normal(k[7], (C,)) * 0.1, jnp.ones((C,)))

    ref = jax.block_until_ready(reference_forward(x, w1, bn1, w2, bn2))

    # batch_tile=1: grid=(2,) "parallel" -> one image per TensorCore on v7x.
    out = jax.block_until_ready(
        basic_block_forward(x, w1, bn1, w2, bn2, batch_tile=1))
    np.testing.assert_allclose(np.asarray(out), np.asarray(ref),
                               rtol=1e-2, atol=1e-2)

    # batch_tile=N: single grid step, matmul RHS widened to (9C, N*H*W)
    # (the v5e/v6e configuration that amortizes per-step overhead).
    out_b = jax.block_until_ready(
        basic_block_forward(x, w1, bn1, w2, bn2, batch_tile=N))
    np.testing.assert_allclose(np.asarray(out_b), np.asarray(ref),
                               rtol=1e-2, atol=1e-2)

    print("KERNEL_OK")
</pallas_src>

<mosaic_0001>
module attributes {stable_mosaic.version = 11 : i64} {
  func.func @basic_block_kernel(%arg0: i32, %arg1: memref<1x32x256xf32, #tpu.memory_space<vmem>>, %arg2: memref<32x288xbf16, #tpu.memory_space<vmem>>, %arg3: memref<32x288xbf16, #tpu.memory_space<vmem>>, %arg4: memref<32x1xf32, #tpu.memory_space<vmem>>, %arg5: memref<32x1xf32, #tpu.memory_space<vmem>>, %arg6: memref<1x32x256xf32, #tpu.memory_space<vmem>>) attributes {dimension_semantics = [#tpu.dimension_semantics<parallel>], iteration_bounds = array<i64: 2>, scalar_prefetch = 0 : i64, scratch_operands = 0 : i64, tpu.core_type = #tpu.core_type<tc>, window_params = [{transform_indices = @transform_0, window_bounds = array<i64: 1, 32, 256>}, {pipeline_mode = #tpu.pipeline_mode<synchronous>, transform_indices = @transform_1, window_bounds = array<i64: 32, 288>}, {pipeline_mode = #tpu.pipeline_mode<synchronous>, transform_indices = @transform_2, window_bounds = array<i64: 32, 288>}, {pipeline_mode = #tpu.pipeline_mode<synchronous>, transform_indices = @transform_3, window_bounds = array<i64: 32, 1>}, {pipeline_mode = #tpu.pipeline_mode<synchronous>, transform_indices = @transform_4, window_bounds = array<i64: 32, 1>}, {transform_indices = @transform_5, window_bounds = array<i64: 1, 32, 256>}]} {
    %0 = tpu.iota {dimensions = array<i32: 1>} : vector<32x256xi32>
    %c16_i32 = arith.constant 16 : i32
    %c0_i32 = arith.constant 0 : i32
    %1 = arith.cmpi eq, %c16_i32, %c0_i32 : i32
    %c1_i32 = arith.constant 1 : i32
    %2 = arith.select %1, %c1_i32, %c16_i32 : i32
    %3 = vector.broadcast %2 : i32 to vector<32x256xi32>
    %4 = arith.remsi %0, %3 : vector<32x256xi32>
    %c0_i32_0 = arith.constant 0 : i32
    %5 = vector.broadcast %c0_i32_0 : i32 to vector<32x256xi32>
    %6 = arith.cmpi ne, %4, %5 : vector<32x256xi32>
    %c0_i32_1 = arith.constant 0 : i32
    %7 = vector.broadcast %c0_i32_1 : i32 to vector<32x256xi32>
    %8 = arith.cmpi slt, %4, %7 : vector<32x256xi32>
    %c0_i32_2 = arith.constant 0 : i32
    %9 = arith.cmpi slt, %2, %c0_i32_2 : i32
    %10 = vector.broadcast %9 : i1 to vector<32x256xi1>
    %11 = vector.broadcast %10 : vector<32x256xi1> to vector<32x256xi1>
    %12 = arith.xori %8, %11 : vector<32x256xi1>
    %13 = arith.andi %12, %6 : vector<32x256xi1>
    %14 = vector.broadcast %2 : i32 to vector<32x256xi32>
    %15 = arith.addi %4, %14 : vector<32x256xi32>
    %16 = arith.select %13, %15, %4 : vector<32x256xi1>, vector<32x256xi32>
    %c0_i32_3 = arith.constant 0 : i32
    %17 = vector.broadcast %c0_i32_3 : i32 to vector<32x256xi32>
    %18 = arith.cmpi ne, %16, %17 : vector<32x256xi32>
    %c15_i32 = arith.constant 15 : i32
    %19 = vector.broadcast %c15_i32 : i32 to vector<32x256xi32>
    %20 = arith.cmpi ne, %16, %19 : vector<32x256xi32>
    %c0 = arith.constant 0 : index
    %c0_4 = arith.constant 0 : index
    %c0_5 = arith.constant 0 : index
    %21 = vector.load %arg1[%c0, %c0_4, %c0_5] : memref<1x32x256xf32, #tpu.memory_space<vmem>>, vector<1x32x256xf32>
    %22 = vector.shape_cast %21 : vector<1x32x256xf32> to vector<32x256xf32>
    %cst = arith.constant 0.000000e+00 : f32
    %23 = vector.broadcast %cst : f32 to vector<32x256xf32>
    %24 = arith.select %20, %22, %23 : vector<32x256xi1>, vector<32x256xf32>
    %25 = arith.truncf %24 : vector<32x256xf32> to vector<32x256xbf16>
    %26 = arith.truncf %22 : vector<32x256xf32> to vector<32x256xbf16>
    %cst_6 = arith.constant 0.000000e+00 : f32
    %27 = vector.broadcast %cst_6 : f32 to vector<32x256xf32>
    %28 = arith.select %18, %22, %27 : vector<32x256xi1>, vector<32x256xf32>
    %29 = arith.truncf %28 : vector<32x256xf32> to vector<32x256xbf16>
    %cst_7 = arith.constant 0.000000e+00 : bf16
    %30 = vector.broadcast %cst_7 : bf16 to vector<32x17xbf16>
    %31 = vector.extract_strided_slice %25 {offsets = [0, 0], sizes = [32, 239], strides = [1, 1]} : vector<32x256xbf16> to vector<32x239xbf16>
    %32 = tpu.concatenate %30, %31 in 1 : vector<32x17xbf16>, vector<32x239xbf16> -> vector<32x256xbf16>
    %cst_8 = arith.constant 0.000000e+00 : bf16
    %33 = vector.broadcast %cst_8 : bf16 to vector<32x16xbf16>
    %34 = vector.extract_strided_slice %26 {offsets = [0, 0], sizes = [32, 240], strides = [1, 1]} : vector<32x256xbf16> to vector<32x240xbf16>
    %35 = tpu.concatenate %33, %34 in 1 : vector<32x16xbf16>, vector<32x240xbf16> -> vector<32x256xbf16>
    %cst_9 = arith.constant 0.000000e+00 : bf16
    %36 = vector.broadcast %cst_9 : bf16 to vector<32x15xbf16>
    %37 = vector.extract_strided_slice %29 {offsets = [0, 0], sizes = [32, 241], strides = [1, 1]} : vector<32x256xbf16> to vector<32x241xbf16>
    %38 = tpu.concatenate %36, %37 in 1 : vector<32x15xbf16>, vector<32x241xbf16> -> vector<32x256xbf16>
    %cst_10 = arith.constant 0.000000e+00 : bf16
    %39 = vector.broadcast %cst_10 : bf16 to vector<32x1xbf16>
    %40 = vector.extract_strided_slice %25 {offsets = [0, 0], sizes = [32, 255], strides = [1, 1]} : vector<32x256xbf16> to vector<32x255xbf16>
    %41 = tpu.concatenate %39, %40 in 1 : vector<32x1xbf16>, vector<32x255xbf16> -> vector<32x256xbf16>
    %42 = vector.extract_strided_slice %29 {offsets = [0, 1], sizes = [32, 255], strides = [1, 1]} : vector<32x256xbf16> to vector<32x255xbf16>
    %cst_11 = arith.constant 0.000000e+00 : bf16
    %43 = vector.broadcast %cst_11 : bf16 to vector<32x1xbf16>
    %44 = tpu.concatenate %42, %43 in 1 : vector<32x255xbf16>, vector<32x1xbf16> -> vector<32x256xbf16>
    %45 = vector.extract_strided_slice %25 {offsets = [0, 15], sizes = [32, 241], strides = [1, 1]} : vector<32x256xbf16> to vector<32x241xbf16>
    %cst_12 = arith.constant 0.000000e+00 : bf16
    %46 = vector.broadcast %cst_12 : bf16 to vector<32x15xbf16>
    %47 = tpu.concatenate %45, %46 in 1 : vector<32x241xbf16>, vector<32x15xbf16> -> vector<32x256xbf16>
    %48 = vector.extract_strided_slice %26 {offsets = [0, 16], sizes = [32, 240], strides = [1, 1]} : vector<32x256xbf16> to vector<32x240xbf16>
    %cst_13 = arith.constant 0.000000e+00 : bf16
    %49 = vector.broadcast %cst_13 : bf16 to vector<32x16xbf16>
    %50 = tpu.concatenate %48, %49 in 1 : vector<32x240xbf16>, vector<32x16xbf16> -> vector<32x256xbf16>
    %51 = vector.extract_strided_slice %29 {offsets = [0, 17], sizes = [32, 239], strides = [1, 1]} : vector<32x256xbf16> to vector<32x239xbf16>
    %cst_14 = arith.constant 0.000000e+00 : bf16
    %52 = vector.broadcast %cst_14 : bf16 to vector<32x17xbf16>
    %53 = tpu.concatenate %51, %52 in 1 : vector<32x239xbf16>, vector<32x17xbf16> -> vector<32x256xbf16>
    %54 = tpu.concatenate %32, %35, %38, %41, %26, %44, %47, %50, %53 in 0 : vector<32x256xbf16>, vector<32x256xbf16>, vector<32x256xbf16>, vector<32x256xbf16>, vector<32x256xbf16>, vector<32x256xbf16>, vector<32x256xbf16>, vector<32x256xbf16>, vector<32x256xbf16> -> vector<288x256xbf16>
    %c0_15 = arith.constant 0 : index
    %c0_16 = arith.constant 0 : index
    %55 = vector.load %arg2[%c0_15, %c0_16] : memref<32x288xbf16, #tpu.memory_space<vmem>>, vector<32x288xbf16>
    %cst_17 = arith.constant dense<0.000000e+00> : vector<32x256xf32>
    %56 = tpu.matmul %55, %54, %cst_17 {dimension_numbers = #tpu.dot_dimension_numbers<[1], [0], [0], [1], [0, 0, 1, 1], [], []>} : vector<32x288xbf16>, vector<288x256xbf16>, vector<32x256xf32> -> vector<32x256xf32>
    %c0_18 = arith.constant 0 : index
    %c0_19 = arith.constant 0 : index
    %57 = vector.load %arg4[%c0_18, %c0_19] : memref<32x1xf32, #tpu.memory_space<vmem>>, vector<32x1xf32>
    %58 = vector.broadcast %57 : vector<32x1xf32> to vector<32x256xf32>
    %59 = arith.addf %56, %58 : vector<32x256xf32>
    %cst_20 = arith.constant 0.000000e+00 : f32
    %60 = vector.broadcast %cst_20 : f32 to vector<32x256xf32>
    %61 = arith.maximumf %59, %60 : vector<32x256xf32>
    %cst_21 = arith.constant 0.000000e+00 : f32
    %62 = vector.broadcast %cst_21 : f32 to vector<32x256xf32>
    %63 = arith.select %20, %61, %62 : vector<32x256xi1>, vector<32x256xf32>
    %64 = arith.truncf %63 : vector<32x256xf32> to vector<32x256xbf16>
    %65 = arith.truncf %61 : vector<32x256xf32> to vector<32x256xbf16>
    %cst_22 = arith.constant 0.000000e+00 : f32
    %66 = vector.broadcast %cst_22 : f32 to vector<32x256xf32>
    %67 = arith.select %18, %61, %66 : vector<32x256xi1>, vector<32x256xf32>
    %68 = arith.truncf %67 : vector<32x256xf32> to vector<32x256xbf16>
    %cst_23 = arith.constant 0.000000e+00 : bf16
    %69 = vector.broadcast %cst_23 : bf16 to vector<32x17xbf16>
    %70 = vector.extract_strided_slice %64 {offsets = [0, 0], sizes = [32, 239], strides = [1, 1]} : vector<32x256xbf16> to vector<32x239xbf16>
    %71 = tpu.concatenate %69, %70 in 1 : vector<32x17xbf16>, vector<32x239xbf16> -> vector<32x256xbf16>
    %cst_24 = arith.constant 0.000000e+00 : bf16
    %72 = vector.broadcast %cst_24 : bf16 to vector<32x16xbf16>
    %73 = vector.extract_strided_slice %65 {offsets = [0, 0], sizes = [32, 240], strides = [1, 1]} : vector<32x256xbf16> to vector<32x240xbf16>
    %74 = tpu.concatenate %72, %73 in 1 : vector<32x16xbf16>, vector<32x240xbf16> -> vector<32x256xbf16>
    %cst_25 = arith.constant 0.000000e+00 : bf16
    %75 = vector.broadcast %cst_25 : bf16 to vector<32x15xbf16>
    %76 = vector.extract_strided_slice %68 {offsets = [0, 0], sizes = [32, 241], strides = [1, 1]} : vector<32x256xbf16> to vector<32x241xbf16>
    %77 = tpu.concatenate %75, %76 in 1 : vector<32x15xbf16>, vector<32x241xbf16> -> vector<32x256xbf16>
    %cst_26 = arith.constant 0.000000e+00 : bf16
    %78 = vector.broadcast %cst_26 : bf16 to vector<32x1xbf16>
    %79 = vector.extract_strided_slice %64 {offsets = [0, 0], sizes = [32, 255], strides = [1, 1]} : vector<32x256xbf16> to vector<32x255xbf16>
    %80 = tpu.concatenate %78, %79 in 1 : vector<32x1xbf16>, vector<32x255xbf16> -> vector<32x256xbf16>
    %81 = vector.extract_strided_slice %68 {offsets = [0, 1], sizes = [32, 255], strides = [1, 1]} : vector<32x256xbf16> to vector<32x255xbf16>
    %cst_27 = arith.constant 0.000000e+00 : bf16
    %82 = vector.broadcast %cst_27 : bf16 to vector<32x1xbf16>
    %83 = tpu.concatenate %81, %82 in 1 : vector<32x255xbf16>, vector<32x1xbf16> -> vector<32x256xbf16>
    %84 = vector.extract_strided_slice %64 {offsets = [0, 15], sizes = [32, 241], strides = [1, 1]} : vector<32x256xbf16> to vector<32x241xbf16>
    %cst_28 = arith.constant 0.000000e+00 : bf16
    %85 = vector.broadcast %cst_28 : bf16 to vector<32x15xbf16>
    %86 = tpu.concatenate %84, %85 in 1 : vector<32x241xbf16>, vector<32x15xbf16> -> vector<32x256xbf16>
    %87 = vector.extract_strided_slice %65 {offsets = [0, 16], sizes = [32, 240], strides = [1, 1]} : vector<32x256xbf16> to vector<32x240xbf16>
    %cst_29 = arith.constant 0.000000e+00 : bf16
    %88 = vector.broadcast %cst_29 : bf16 to vector<32x16xbf16>
    %89 = tpu.concatenate %87, %88 in 1 : vector<32x240xbf16>, vector<32x16xbf16> -> vector<32x256xbf16>
    %90 = vector.extract_strided_slice %68 {offsets = [0, 17], sizes = [32, 239], strides = [1, 1]} : vector<32x256xbf16> to vector<32x239xbf16>
    %cst_30 = arith.constant 0.000000e+00 : bf16
    %91 = vector.broadcast %cst_30 : bf16 to vector<32x17xbf16>
    %92 = tpu.concatenate %90, %91 in 1 : vector<32x239xbf16>, vector<32x17xbf16> -> vector<32x256xbf16>
    %93 = tpu.concatenate %71, %74, %77, %80, %65, %83, %86, %89, %92 in 0 : vector<32x256xbf16>, vector<32x256xbf16>, vector<32x256xbf16>, vector<32x256xbf16>, vector<32x256xbf16>, vector<32x256xbf16>, vector<32x256xbf16>, vector<32x256xbf16>, vector<32x256xbf16> -> vector<288x256xbf16>
    %c0_31 = arith.constant 0 : index
    %c0_32 = arith.constant 0 : index
    %94 = vector.load %arg3[%c0_31, %c0_32] : memref<32x288xbf16, #tpu.memory_space<vmem>>, vector<32x288xbf16>
    %cst_33 = arith.constant dense<0.000000e+00> : vector<32x256xf32>
    %95 = tpu.matmul %94, %93, %cst_33 {dimension_numbers = #tpu.dot_dimension_numbers<[1], [0], [0], [1], [0, 0, 1, 1], [], []>} : vector<32x288xbf16>, vector<288x256xbf16>, vector<32x256xf32> -> vector<32x256xf32>
    %c0_34 = arith.constant 0 : index
    %c0_35 = arith.constant 0 : index
    %96 = vector.load %arg5[%c0_34, %c0_35] : memref<32x1xf32, #tpu.memory_space<vmem>>, vector<32x1xf32>
    %97 = vector.broadcast %96 : vector<32x1xf32> to vector<32x256xf32>
    %98 = arith.addf %95, %97 : vector<32x256xf32>
    %99 = arith.addf %98, %22 : vector<32x256xf32>
    %cst_36 = arith.constant 0.000000e+00 : f32
    %100 = vector.broadcast %cst_36 : f32 to vector<32x256xf32>
    %101 = arith.maximumf %99, %100 : vector<32x256xf32>
    %c0_37 = arith.constant 0 : index
    %c0_38 = arith.constant 0 : index
    %c0_39 = arith.constant 0 : index
    %102 = vector.load %arg6[%c0_37, %c0_38, %c0_39] : memref<1x32x256xf32, #tpu.memory_space<vmem>>, vector<1x32x256xf32>
    %103 = vector.shape_cast %102 : vector<1x32x256xf32> to vector<32x256xf32>
    %104 = vector.shape_cast %101 : vector<32x256xf32> to vector<1x32x256xf32>
    tpu.vector_store %arg6[%c0_37, %c0_38, %c0_39], %104 {strides = array<i32>} : memref<1x32x256xf32, #tpu.memory_space<vmem>>, vector<1x32x256xf32>,
    return
  }
  func.func @transform_0(%arg0: i32) -> (i32, i32, i32) {
    %c0_i32 = arith.constant 0 : i32
    %c0_i32_0 = arith.constant 0 : i32
    %c0_i32_1 = arith.constant 0 : i32
    return %arg0, %c0_i32, %c0_i32_0 : i32, i32, i32
  }
  func.func @transform_1(%arg0: i32) -> (i32, i32) {
    %c0_i32 = arith.constant 0 : i32
    %c0_i32_0 = arith.constant 0 : i32
    %c0_i32_1 = arith.constant 0 : i32
    return %c0_i32, %c0_i32_0 : i32, i32
  }
  func.func @transform_2(%arg0: i32) -> (i32, i32) {
    %c0_i32 = arith.constant 0 : i32
    %c0_i32_0 = arith.constant 0 : i32
    %c0_i32_1 = arith.constant 0 : i32
    return %c0_i32, %c0_i32_0 : i32, i32
  }
  func.func @transform_3(%arg0: i32) -> (i32, i32) {
    %c0_i32 = arith.constant 0 : i32
    %c0_i32_0 = arith.constant 0 : i32
    %c0_i32_1 = arith.constant 0 : i32
    return %c0_i32, %c0_i32_0 : i32, i32
  }
  func.func @transform_4(%arg0: i32) -> (i32, i32) {
    %c0_i32 = arith.constant 0 : i32
    %c0_i32_0 = arith.constant 0 : i32
    %c0_i32_1 = arith.constant 0 : i32
    return %c0_i32, %c0_i32_0 : i32, i32
  }
  func.func @transform_5(%arg0: i32) -> (i32, i32, i32) {
    %c0_i32 = arith.constant 0 : i32
    %c0_i32_0 = arith.constant 0 : i32
    %c0_i32_1 = arith.constant 0 : i32
    return %arg0, %c0_i32, %c0_i32_0 : i32, i32, i32
  }
}

</mosaic_0001>

<llo_original>
// kernel: basic_block_forward.1
$region0: #{basic_block_forward.1}
  #allocation0 [shape = 'u32[]', space=smem, size = 0x4, offset = 0x4, fixed_abs, tag = 'smem constant byte address 0x4 - core index']
  #allocation1 [shape = 'u32[144,128]{1,0:T(1,128)}', space=vmem, size = 0x12000, scoped, tag = 'internal scratch']
  %s0 = inlined_call_operand.vmem [shape: f32[2,32,256], index: 0, kind: input, shape index: {}]
  %s1 = inlined_call_operand.vmem [shape: bf16[32,288], index: 1, kind: input, shape index: {}]
  %s2 = inlined_call_operand.vmem [shape: bf16[32,288], index: 2, kind: input, shape index: {}]
  %s3 = inlined_call_operand.vmem [shape: f32[32,1], index: 3, kind: input, shape index: {}]
  %s4 = inlined_call_operand.vmem [shape: f32[32,1], index: 4, kind: input, shape index: {}]
  %s5 = inlined_call_operand.vmem [shape: f32[2,32,256], index: 5, kind: output, shape index: {}]
  %s6 = sld [smem:[#allocation0]]
  $region53: #{basic_block_forward.1} parent=0
    _
  %s8 = ssub.s32 1, %s6
  %s9 = scalar_select 0, %s8, %s6
  loop: start=0, step=1, limit=4
  $region2: #{basic_block_forward.1} parent=0 // loop_pre_header
    _
  $region3: #{basic_block_forward.1} parent=0 // loop_header
    %s11 = sphi 0, %s15
    %p12 = scmp.ge.s32.totalorder %s11, 4
    %s21 = sphi 0, %s23
    %s24 = sphi 0, %s21
    %s25 = sphi 0, %s24
    %s41 = sphi 0, %s25
    %s45 = sphi 0, %s45
    %s47 = sphi 0, %s45
    %s48 = sphi 0, %s47
    %s62 = sphi 0, %s48
    %s66 = sphi 0, %s66
    %s68 = sphi 0, %s66
    %s69 = sphi 0, %s68
    %s83 = sphi 0, %s69
    %s87 = sphi 0, %s87
    %s89 = sphi 0, %s87
    %s90 = sphi 0, %s89
    %s104 = sphi 0, %s90
    %s108 = sphi 0, %s108
    %s110 = sphi 0, %s108
    %s111 = sphi 0, %s110
    %s125 = sphi 0, %s111
    %s131 = sphi 0, %s133
    %s134 = sphi 0, %s131
    %s135 = sphi 0, %s134
    %s151 = sphi 0, %s135
  $region4: #{basic_block_forward.1} parent=0 // loop_header_branch
    %14 = sbr.rel (%p12) target = $region8
  $region5: #{basic_block_forward.1} parent=0 // loop_body
    %s16 = ssub.s32 %s11, 1
    %s17 = ssub.s32 %s11, 2
    %s18 = sadd.s32 %s11, 1
    %s19 = ssub.s32 %s11, %s18
    %p20 = scmp.eq.s32.totalorder %s19, 0
    %s22 = sadd.s32 %s21, 1
    %s23 = scalar_select %p20, %s21, %s22
    %p26 = pneg %p20
    %p27 = scmp.eq.s32.totalorder %s11, 1
    %p28 = por %p26, %p27
    %p29 = scmp.ne.s32.totalorder %s21, %s24
    %p30 = scmp.eq.s32.totalorder %s11, 0
    %p31 = por %p29, %p30
    %p32 = scmp.ne.s32.totalorder %s21, %s24
    %p33 = scmp.eq.s32.totalorder %s16, 1
    %p34 = por %p32, %p33
    %p35 = scmp.ne.s32.totalorder %s24, %s25
    %p36 = scmp.eq.s32.totalorder %s16, 0
    %p37 = por %p35, %p36
    %p38 = scmp.ne.s32.totalorder %s24, %s25
    %p39 = scmp.eq.s32.totalorder %s17, 1
    %p40 = por %p38, %p39
    %p42 = scmp.ne.s32.totalorder %s25, %s41
    %p43 = scmp.eq.s32.totalorder %s17, 0
    %p44 = por %p42, %p43
    %s46 = sadd.s32 %s45, 1
    %p49 = scmp.eq.s32.totalorder %s11, 1
    %p50 = scmp.ne.s32.totalorder %s45, %s47
    %p51 = scmp.eq.s32.totalorder %s11, 0
    %p52 = por %p50, %p51
    %p53 = scmp.ne.s32.totalorder %s45, %s47
    %p54 = scmp.eq.s32.totalorder %s16, 1
    %p55 = por %p53, %p54
    %p56 = scmp.ne.s32.totalorder %s47, %s48
    %p57 = scmp.eq.s32.totalorder %s16, 0
    %p58 = por %p56, %p57
    %p59 = scmp.ne.s32.totalorder %s47, %s48
    %p60 = scmp.eq.s32.totalorder %s17, 1
    %p61 = por %p59, %p60
    %p63 = scmp.ne.s32.totalorder %s48, %s62
    %p64 = scmp.eq.s32.totalorder %s17, 0
    %p65 = por %p63, %p64
    %s67 = sadd.s32 %s66, 1
    %p70 = scmp.eq.s32.totalorder %s11, 1
    %p71 = scmp.ne.s32.totalorder %s66, %s68
    %p72 = scmp.eq.s32.totalorder %s11, 0
    %p73 = por %p71, %p72
    %p74 = scmp.ne.s32.totalorder %s66, %s68
    %p75 = scmp.eq.s32.totalorder %s16, 1
    %p76 = por %p74, %p75
    %p77 = scmp.ne.s32.totalorder %s68, %s69
    %p78 = scmp.eq.s32.totalorder %s16, 0
    %p79 = por %p77, %p78
    %p80 = scmp.ne.s32.totalorder %s68, %s69
    %p81 = scmp.eq.s32.totalorder %s17, 1
    %p82 = por %p80, %p81
    %p84 = scmp.ne.s32.totalorder %s69, %s83
    %p85 = scmp.eq.s32.totalorder %s17, 0
    %p86 = por %p84, %p85
    %s88 = sadd.s32 %s87, 1
    %p91 = scmp.eq.s32.totalorder %s11, 1
    %p92 = scmp.ne.s32.totalorder %s87, %s89
    %p93 = scmp.eq.s32.totalorder %s11, 0
    %p94 = por %p92, %p93
    %p95 = scmp.ne.s32.totalorder %s87, %s89
    %p96 = scmp.eq.s32.totalorder %s16, 1
    %p97 = por %p95, %p96
    %p98 = scmp.ne.s32.totalorder %s89, %s90
    %p99 = scmp.eq.s32.totalorder %s16, 0
    %p100 = por %p98, %p99
    %p101 = scmp.ne.s32.totalorder %s89, %s90
    %p102 = scmp.eq.s32.totalorder %s17, 1
    %p103 = por %p101, %p102
    %p105 = scmp.ne.s32.totalorder %s90, %s104
    %p106 = scmp.eq.s32.totalorder %s17, 0
    %p107 = por %p105, %p106
    %s109 = sadd.s32 %s108, 1
    %p112 = scmp.eq.s32.totalorder %s11, 1
    %p113 = scmp.ne.s32.totalorder %s108, %s110
    %p114 = scmp.eq.s32.totalorder %s11, 0
    %p115 = por %p113, %p114
    %p116 = scmp.ne.s32.totalorder %s108, %s110
    %p117 = scmp.eq.s32.totalorder %s16, 1
    %p118 = por %p116, %p117
    %p119 = scmp.ne.s32.totalorder %s110, %s111
    %p120 = scmp.eq.s32.totalorder %s16, 0
    %p121 = por %p119, %p120
    %p122 = scmp.ne.s32.totalorder %s110, %s111
    %p123 = scmp.eq.s32.totalorder %s17, 1
    %p124 = por %p122, %p123
    %p126 = scmp.ne.s32.totalorder %s111, %s125
    %p127 = scmp.eq.s32.totalorder %s17, 0
    %p128 = por %p126, %p127
    %s129 = ssub.s32 %s11, %s18
    %p130 = scmp.eq.s32.totalorder %s129, 0
    %s132 = sadd.s32 %s131, 1
    %s133 = scalar_select %p130, %s131, %s132
    %p136 = pneg %p130
    %p137 = scmp.eq.s32.totalorder %s11, 1
    %p138 = por %p136, %p137
    %p139 = scmp.ne.s32.totalorder %s131, %s134
    %p140 = scmp.eq.s32.totalorder %s11, 0
    %p141 = por %p139, %p140
    %p142 = scmp.ne.s32.totalorder %s131, %s134
    %p143 = scmp.eq.s32.totalorder %s16, 1
    %p144 = por %p142, %p143
    %p145 = scmp.ne.s32.totalorder %s134, %s135
    %p146 = scmp.eq.s32.totalorder %s16, 0
    %p147 = por %p145, %p146
    %p148 = scmp.ne.s32.totalorder %s134, %s135
    %p149 = scmp.eq.s32.totalorder %s17, 1
    %p150 = por %p148, %p149
    %p152 = scmp.ne.s32.totalorder %s135, %s151
    %p153 = scmp.eq.s32.totalorder %s17, 0
    %p154 = por %p152, %p153
    %p155 = scmp.le.s32.totalorder 1, %s11
    %p156 = scmp.lt.s32.totalorder %s11, 3
    %p157 = pnand %p155, %p156
    %p158 = pneg %p157
    // Predicated region
    $region9: #{basic_block_forward.1} parent=5 // pred_check
      _
    $region10: #{basic_block_forward.1} parent=5 // pred_check_branch
      %160 = sbr.rel (%p157) target = $region12
    $region11: #{basic_block_forward.1} parent=5 // pred_region
      %s161 = ssub.s32 %s11, 1
      // Predicated region
      $region13: #{basic_block_forward.1} parent=11 // pred_check
        %p162 = pneg %p58
      $region14: #{basic_block_forward.1} parent=11 // pred_check_branch
        %164 = sbr.rel (%p162) target = $region16
      $region15: #{basic_block_forward.1} parent=11 // pred_region
        _
      $region16: #{basic_block_forward.1} parent=11 // pred_fallthru
        _
      // Predicated region
      $region17: #{basic_block_forward.1} parent=11 // pred_check
        %p165 = pneg %p79
      $region18: #{basic_block_forward.1} parent=11 // pred_check_branch
        %167 = sbr.rel (%p165) target = $region20
      $region19: #{basic_block_forward.1} parent=11 // pred_region
        _
      $region20: #{basic_block_forward.1} parent=11 // pred_fallthru
        _
      // Predicated region
      $region21: #{basic_block_forward.1} parent=11 // pred_check
        %p168 = pneg %p100
      $region22: #{basic_block_forward.1} parent=11 // pred_check_branch
        %170 = sbr.rel (%p168) target = $region24
      $region23: #{basic_block_forward.1} parent=11 // pred_region
        _
      $region24: #{basic_block_forward.1} parent=11 // pred_fallthru
        _
      // Predicated region
      $region25: #{basic_block_forward.1} parent=11 // pred_check
        %p171 = pneg %p121
      $region26: #{basic_block_forward.1} parent=11 // pred_check_branch
        %173 = sbr.rel (%p171) target = $region28
      $region27: #{basic_block_forward.1} parent=11 // pred_region
        _
      $region28: #{basic_block_forward.1} parent=11 // pred_fallthru
        _
    $region12: #{basic_block_forward.1} parent=5 // pred_fallthru
      _
    %p174 = scmp.lt.s32.totalorder %s11, 2
    // Predicated region
    $region29: #{basic_block_forward.1} parent=5 // pred_check
      %p175 = pneg %p174
    $region30: #{basic_block_forward.1} parent=5 // pred_check_branch
      %177 = sbr.rel (%p175) target = $region32
    $region31: #{basic_block_forward.1} parent=5 // pred_region
      // Predicated region
      $region33: #{basic_block_forward.1} parent=31 // pred_check
        %p178 = pneg %p31
      $region34: #{basic_block_forward.1} parent=31 // pred_check_branch
        %180 = sbr.rel (%p178) target = $region36
      $region35: #{basic_block_forward.1} parent=31 // pred_region
        %p181 = scmp.lt.s32.totalorder %s11, 1
        %s182 = scalar_select %p181, %s11, 1
        %s183 = smul.addr %s182, 8
        %s184 = smul.addr %s183, 8
        %s185 = scalar_lea.vmem %s0, %s184
      $region36: #{basic_block_forward.1} parent=31 // pred_fallthru
        _
    $region32: #{basic_block_forward.1} parent=5 // pred_fallthru
      _
    %p186 = scmp.le.s32.totalorder 1, %s11
    %p187 = scmp.lt.s32.totalorder %s11, 3
    %p188 = pnand %p186, %p187
    %p189 = pneg %p188
    // Predicated region
    $region37: #{basic_block_forward.1} parent=5 // pred_check
      _
    $region38: #{basic_block_forward.1} parent=5 // pred_check_branch
      %191 = sbr.rel (%p188) target = $region40
    $region39: #{basic_block_forward.1} parent=5 // pred_region
      %s192 = ssub.s32 %s11, 1
      %p193 = scmp.lt.s32.totalorder %s16, 1
      %s194 = scalar_select %p193, %s16, 1
      %s195 = smul.addr %s194, 8
      %s196 = smul.addr %s195, 8
      %s197 = scalar_lea.vmem %s0, %s196
      %p198 = pneg %p37
      %p199 = pneg %p34
      %p200 = pneg %p58
      %p201 = pneg %p55
      %p202 = pneg %p79
      %p203 = pneg %p76
      %p204 = pneg %p100
      %p205 = pneg %p97
      %p206 = pneg %p121
      %p207 = pneg %p118
      %p208 = pneg %p147
      %p209 = pneg %p144
      %p210 = scmp.lt.s32.totalorder %s16, 1
      %s211 = scalar_select %p210, %s16, 1
      %s212 = smul.addr %s211, 8
      %s213 = smul.addr %s212, 8
      %s214 = scalar_lea.vmem %s5, %s213
      %p215 = scmp.lt.s32.totalorder %s16, 1
      %s216 = scalar_select %p215, %s16, 1
      %s217 = smul.addr %s216, 8
      %s218 = smul.addr %s217, 8
      %s219 = scalar_lea.vmem %s0, %s218
      %p220 = scmp.lt.s32.totalorder %s16, 1
      %s221 = scalar_select %p220, %s16, 1
      %s222 = smul.addr %s221, 8
      %s223 = smul.addr %s222, 8
      %s224 = scalar_lea.vmem %s5, %s223
      %v226 = vlaneseq
      %v227 = vand.u32 %v226, 127
      %v228 = vadd.s32 %v227, 128
      %vm229 = vcmp.lt.s32.totalorder %v227, 0
      %v230 = vsub.s32 0, %v227
      %v231 = vsel %vm229, %v230, %v227
      %v232 = vshrl.u32 %v231, 4
      %v233 = vand.u32 %v231, 15
      %v234 = vsub.s32 0, %v233
      %v235 = vsel %vm229, %v234, %v233
      %vm236 = vcmp.lt.s32.totalorder %v228, 0
      %v237 = vsub.s32 0, %v228
      %v238 = vsel %vm236, %v237, %v228
      %v239 = vshrl.u32 %v238, 4
      %v240 = vand.u32 %v238, 15
      %v241 = vsub.s32 0, %v240
      %v242 = vsel %vm236, %v241, %v240
      %vm243 = vcmp.ne.s32.totalorder %v235, 0
      %vm244 = vcmp.ne.s32.totalorder %v242, 0
      %vm245 = vcmp.lt.s32.totalorder %v235, 0
      %vm246 = vcmp.lt.s32.totalorder %v242, 0
      %vm247 = vmand %vm245, %vm243
      %vm248 = vmand %vm246, %vm244
      %v249 = vadd.s32 %v235, 16
      %v250 = vadd.s32 %v242, 16
      %v251 = vsel %vm247, %v249, %v235
      %v252 = vsel %vm248, %v250, %v242
      %vm253 = vcmp.ne.s32.totalorder %v251, 0
      %vm254 = vcmp.ne.s32.totalorder %v252, 0
      %vm255 = vcmp.ne.s32.totalorder %v251, 15
      %vm256 = vcmp.ne.s32.totalorder %v252, 15
      %v257 = vld [vmem:[%s219] sm:$0xff]
      %v258 = vld [vmem:[%s219 + $0x8] sm:$0xff]
      %v259 = vld [vmem:[%s219 + $0x10] sm:$0xff]
      %v260 = vld [vmem:[%s219 + $0x18] sm:$0xff]
      %v261 = vld [vmem:[%s219 + $0x20] sm:$0xff]
      %v262 = vld [vmem:[%s219 + $0x28] sm:$0xff]
      %v263 = vld [vmem:[%s219 + $0x30] sm:$0xff]
      %v264 = vld [vmem:[%s219 + $0x38] sm:$0xff]
      %v265 = vsel %vm255, %v257, 0.0
      %v266 = vsel %vm256, %v258, 0.0
      %v267 = vsel %vm255, %v259, 0.0
      %v268 = vsel %vm256, %v260, 0.0
      %v269 = vsel %vm255, %v261, 0.0
      %v270 = vsel %vm256, %v262, 0.0
      %v271 = vsel %vm255, %v263, 0.0
      %v272 = vsel %vm256, %v264, 0.0
      %v273 = vpack.c.bf16 %v267, %v265
      %v274 = vpack.c.bf16 %v268, %v266
      %v275 = vpack.c.bf16 %v271, %v269
      %v276 = vpack.c.bf16 %v272, %v270
      %v277 = vpack.c.bf16 %v259, %v257
      %v278 = vpack.c.bf16 %v260, %v258
      %v279 = vpack.c.bf16 %v263, %v261
      %v280 = vpack.c.bf16 %v264, %v262
      %v281 = vsel %vm253, %v257, 0.0
      %v282 = vsel %vm254, %v258, 0.0
      %v283 = vsel %vm253, %v259, 0.0
      %v284 = vsel %vm254, %v260, 0.0
      %v285 = vsel %vm253, %v261, 0.0
      %v286 = vsel %vm254, %v262, 0.0
      %v287 = vsel %vm253, %v263, 0.0
      %v288 = vsel %vm254, %v264, 0.0
      %v289 = vpack.c.bf16 %v283, %v281
      %v290 = vpack.c.bf16 %v284, %v282
      %v291 = vpack.c.bf16 %v287, %v285
      %v292 = vpack.c.bf16 %v288, %v286
      %297 = vrot.lane.b32.xlu0 %v273, 17
      %v298 = vpop.permute.xlu0 %297
      %299 = vrot.lane.b32.xlu0 %v274, 17
      %v300 = vpop.permute.xlu0 %299
      %301 = vrot.lane.b32.xlu0 %v275, 17
      %v302 = vpop.permute.xlu0 %301
      %303 = vrot.lane.b32.xlu0 %v276, 17
      %v304 = vpop.permute.xlu0 %303
      %vm305 = vcmask 138240
      %v306 = vsel %vm305, %v298, %v300
      %v307 = vsel %vm305, %v302, %v304
      %vm310 = vcmask 138240
      %v313 = vsel %vm310, 0, %v298
      %v316 = vsel %vm310, 0, %v302
      %322 = vrot.lane.b32.xlu0 %v277, 16
      %v323 = vpop.permute.xlu0 %322
      %324 = vrot.lane.b32.xlu0 %v278, 16
      %v325 = vpop.permute.xlu0 %324
      %326 = vrot.lane.b32.xlu0 %v279, 16
      %v327 = vpop.permute.xlu0 %326
      %328 = vrot.lane.b32.xlu0 %v280, 16
      %v329 = vpop.permute.xlu0 %328
      %vm330 = vcmask 130048
      %v331 = vsel %vm330, %v323, %v325
      %v332 = vsel %vm330, %v327, %v329
      %vm335 = vcmask 130048
      %v337 = vsel %vm335, 0, %v323
      %v340 = vsel %vm335, 0, %v327
      %346 = vrot.lane.b32.xlu0 %v289, 15
      %v347 = vpop.permute.xlu0 %346
      %348 = vrot.lane.b32.xlu0 %v290, 15
      %v349 = vpop.permute.xlu0 %348
      %350 = vrot.lane.b32.xlu0 %v291, 15
      %v351 = vpop.permute.xlu0 %350
      %352 = vrot.lane.b32.xlu0 %v292, 15
      %v353 = vpop.permute.xlu0 %352
      %vm354 = vcmask 121856
      %v355 = vsel %vm354, %v347, %v349
      %v356 = vsel %vm354, %v351, %v353
      %vm359 = vcmask 121856
      %v361 = vsel %vm359, 0, %v347
      %v364 = vsel %vm359, 0, %v351
      %366 = vrot.lane.b32.xlu0 %v273, 1
      %v367 = vpop.permute.xlu0 %366
      %368 = vrot.lane.b32.xlu0 %v274, 1
      %v369 = vpop.permute.xlu0 %368
      %370 = vrot.lane.b32.xlu0 %v275, 1
      %v371 = vpop.permute.xlu0 %370
      %372 = vrot.lane.b32.xlu0 %v276, 1
      %v373 = vpop.permute.xlu0 %372
      %vm374 = vcmask 7168
      %v375 = vsel %vm374, %v367, %v369
      %v376 = vsel %vm374, %v371, %v373
      %vm379 = vcmask 7168
      %v381 = vsel %vm379, 0, %v367
      %v384 = vsel %vm379, 0, %v371
      %386 = vrot.lane.b32.xlu0 %v289, 127
      %v387 = vpop.permute.xlu0 %386
      %388 = vrot.lane.b32.xlu0 %v290, 127
      %v389 = vpop.permute.xlu0 %388
      %390 = vrot.lane.b32.xlu0 %v291, 127
      %v391 = vpop.permute.xlu0 %390
      %392 = vrot.lane.b32.xlu0 %v292, 127
      %v393 = vpop.permute.xlu0 %392
      %vm394 = vcmask 1039360
      %v395 = vsel %vm394, %v387, %v389
      %v396 = vsel %vm394, %v391, %v393
      %vm399 = vcmask 1039360
      %v401 = vsel %vm399, %v389, 0
      %v404 = vsel %vm399, %v393, 0
      %406 = vrot.lane.b32.xlu0 %v273, 113
      %v407 = vpop.permute.xlu0 %406
      %408 = vrot.lane.b32.xlu0 %v274, 113
      %v409 = vpop.permute.xlu0 %408
      %410 = vrot.lane.b32.xlu0 %v275, 113
      %v411 = vpop.permute.xlu0 %410
      %412 = vrot.lane.b32.xlu0 %v276, 113
      %v413 = vpop.permute.xlu0 %412
      %vm414 = vcmask 924672
      %v415 = vsel %vm414, %v407, %v409
      %v416 = vsel %vm414, %v411, %v413
      %vm419 = vcmask 924672
      %v421 = vsel %vm419, %v409, 0
      %v424 = vsel %vm419, %v413, 0
      %426 = vrot.lane.b32.xlu0 %v277, 112
      %v427 = vpop.permute.xlu0 %426
      %428 = vrot.lane.b32.xlu0 %v278, 112
      %v429 = vpop.permute.xlu0 %428
      %430 = vrot.lane.b32.xlu0 %v279, 112
      %v431 = vpop.permute.xlu0 %430
      %432 = vrot.lane.b32.xlu0 %v280, 112
      %v433 = vpop.permute.xlu0 %432
      %vm434 = vcmask 916480
      %v435 = vsel %vm434, %v427, %v429
      %v436 = vsel %vm434, %v431, %v433
      %vm439 = vcmask 916480
      %v441 = vsel %vm439, %v429, 0
      %v444 = vsel %vm439, %v433, 0
      %446 = vrot.lane.b32.xlu0 %v289, 111
      %v447 = vpop.permute.xlu0 %446
      %448 = vrot.lane.b32.xlu0 %v290, 111
      %v449 = vpop.permute.xlu0 %448
      %450 = vrot.lane.b32.xlu0 %v291, 111
      %v451 = vpop.permute.xlu0 %450
      %452 = vrot.lane.b32.xlu0 %v292, 111
      %v453 = vpop.permute.xlu0 %452
      %vm454 = vcmask 908288
      %v455 = vsel %vm454, %v447, %v449
      %v456 = vsel %vm454, %v451, %v453
      %vm459 = vcmask 908288
      %v461 = vsel %vm459, %v449, 0
      %v464 = vsel %vm459, %v453, 0
      %v466 = vld [vmem:[%s1] sm:$0xff]
      %v467 = vld [vmem:[%s1 + $0x8] sm:$0xf]
      %v468 = vld [vmem:[%s1 + $0xc] sm:$0xff]
      %v469 = vld [vmem:[%s1 + $0x14] sm:$0xf]
      %v470 = vld [vmem:[%s1 + $0x18] sm:$0xff]
      %v471 = vld [vmem:[%s1 + $0x20] sm:$0xf]
      %v472 = vld [vmem:[%s1 + $0x24] sm:$0xff]
      %v473 = vld [vmem:[%s1 + $0x2c] sm:$0xf]
      %v474 = vld [vmem:[%s3] sm:$0xff]
      %v475 = vld [vmem:[%s3 + $0x8] sm:$0xff]
      %v476 = vld [vmem:[%s3 + $0x10] sm:$0xff]
      %v477 = vld [vmem:[%s3 + $0x18] sm:$0xff]
      %479 = vset.pattern.permute.xlu0 0
      %480 = vperm.xlu0 %479, %v474
      %v481 = vpop.permute.xlu0 %480
      %484 = vset.pattern.permute.xlu0 0
      %485 = vperm.xlu0 %484, %v475
      %v486 = vpop.permute.xlu0 %485
      %489 = vset.pattern.permute.xlu0 0
      %490 = vperm.xlu0 %489, %v476
      %v491 = vpop.permute.xlu0 %490
      %494 = vset.pattern.permute.xlu0 0
      %495 = vperm.xlu0 %494, %v477
      %v496 = vpop.permute.xlu0 %495
      %v506 = vunpack.c.l.b16 %v466
      %v507 = vunpack.c.h.b16 %v466
      %v508 = vunpack.c.l.b16 %v467
      %v509 = vunpack.c.l.b16 %v468
      %v510 = vunpack.c.h.b16 %v468
      %v511 = vunpack.c.l.b16 %v469
      %v512 = vunpack.c.l.b16 %v470
      %v513 = vunpack.c.h.b16 %v470
      %v514 = vunpack.c.l.b16 %v471
      %v515 = vunpack.c.l.b16 %v472
      %v516 = vunpack.c.h.b16 %v472
      %v517 = vunpack.c.l.b16 %v473
      %v518 = vpack.c.b16 %v509, %v506
      %v519 = vpack.c.b16 %v510, %v507
      %v520 = vpack.c.b16 %v511, %v508
      %v521 = vpack.c.b16 %v515, %v512
      %v522 = vpack.c.b16 %v516, %v513
      %v523 = vpack.c.b16 %v517, %v514
      %vm528 = vcmask 261120
      %v530 = vsel %vm528, %v520, 0
      %v533 = vsel %vm528, %v523, 0
      %535 = vmatprep.subr.bf16.mxu0 %v376
      %536 = vmatpush1.bf16.msra.mxu0 %v384
      %537 = vmatprep.subr.bf16.mxu0 %v375
      %538 = vmatpush1.bf16.msra.mxu0 %v381
      %539 = vmatprep.subr.bf16.mxu0 %v356
      %540 = vmatpush1.bf16.msra.mxu0 %v364
      %541 = vmatprep.subr.bf16.mxu0 %v355
      %542 = vmatpush1.bf16.msra.mxu0 %v361
      %543 = vmatprep.subr.bf16.mxu0 %v332
      %544 = vmatpush1.bf16.msra.mxu0 %v340
      %545 = vmatprep.subr.bf16.mxu0 %v331
      %546 = vmatpush1.bf16.msra.mxu0 %v337
      %547 = vmatprep.subr.bf16.mxu0 %v307
      %548 = vmatpush1.bf16.msra.mxu0 %v316
      %549 = vmatprep.subr.bf16.mxu0 %v306
      %550 = vmatpush1.bf16.msra.mxu0 %v313
      %551 = vmatprep.subr.bf16.mxu0 %v444
      %552 = vmatpush2.bf16.msra.mxu0 %v436
      %553 = vmatprep.subr.bf16.mxu0 %v441
      %554 = vmatpush2.bf16.msra.mxu0 %v435
      %555 = vmatprep.subr.bf16.mxu0 %v424
      %556 = vmatpush2.bf16.msra.mxu0 %v416
      %557 = vmatprep.subr.bf16.mxu0 %v421
      %558 = vmatpush2.bf16.msra.mxu0 %v415
      %559 = vmatprep.subr.bf16.mxu0 %v404
      %560 = vmatpush2.bf16.msra.mxu0 %v396
      %561 = vmatprep.subr.bf16.mxu0 %v401
      %562 = vmatpush2.bf16.msra.mxu0 %v395
      %563 = vmatprep.subr.bf16.mxu0 %v280
      %564 = vmatpush2.bf16.msra.mxu0 %v279
      %565 = vmatprep.subr.bf16.mxu0 %v278
      %566 = vmatpush2.bf16.msra.mxu0 %v277
      %567 = vmatprep.mubr.bf16.mxu0 %v519
      %568 = vmatmul.mubr.bf16.gmra.mxu0 %v518
      %v569 = vpop.f32.mrf.mxu0
      %v570 = vadd.f32 %v481, %v569
      %v571 = vpop.f32.mrf.mxu0
      %v572 = vadd.f32 %v481, %v571
      %v573 = vpop.f32.mrf.mxu0
      %v574 = vadd.f32 %v486, %v573
      %v575 = vpop.f32.mrf.mxu0
      %v576 = vadd.f32 %v486, %v575
      %577 = vmatprep.mubr.bf16.mxu0 %v522
      %578 = vmatmul.mubr.bf16.gmra.mxu0 %v521
      %v579 = vpop.f32.mrf.mxu0
      %v580 = vadd.f32 %v491, %v579
      %v581 = vpop.f32.mrf.mxu0
      %v582 = vadd.f32 %v491, %v581
      %v583 = vpop.f32.mrf.mxu0
      %v584 = vadd.f32 %v496, %v583
      %v585 = vpop.f32.mrf.mxu0
      %v586 = vadd.f32 %v496, %v585
      %587 = vdwg.mxu0
      %588 = vmatprep.subr.bf16.mxu0 0
      %589 = vmatpush1.bf16.msra.mxu0 0
      %590 = vmatprep.subr.bf16.mxu0 0
      %591 = vmatpush1.bf16.msra.mxu0 0
      %592 = vmatprep.subr.bf16.mxu0 0
      %593 = vmatpush1.bf16.msra.mxu0 0
      %594 = vmatprep.subr.bf16.mxu0 0
      %595 = vmatpush1.bf16.msra.mxu0 0
      %596 = vmatprep.subr.bf16.mxu0 0
      %597 = vmatpush1.bf16.msra.mxu0 0
      %598 = vmatprep.subr.bf16.mxu0 0
      %599 = vmatpush1.bf16.msra.mxu0 0
      %600 = vmatprep.subr.bf16.mxu0 %v464
      %601 = vmatpush1.bf16.msra.mxu0 %v456
      %602 = vmatprep.subr.bf16.mxu0 %v461
      %603 = vmatpush1.bf16.msra.mxu0 %v455
      %604 = vmatprep.subr.bf16.mxu0 0
      %605 = vmatpush2.bf16.msra.mxu0 0
      %606 = vmatprep.subr.bf16.mxu0 0
      %607 = vmatpush2.bf16.msra.mxu0 0
      %608 = vmatprep.subr.bf16.mxu0 0
      %609 = vmatpush2.bf16.msra.mxu0 0
      %610 = vmatprep.subr.bf16.mxu0 0
      %611 = vmatpush2.bf16.msra.mxu0 0
      %612 = vmatprep.subr.bf16.mxu0 0
      %613 = vmatpush2.bf16.msra.mxu0 0
      %614 = vmatprep.subr.bf16.mxu0 0
      %615 = vmatpush2.bf16.msra.mxu0 0
      %616 = vmatprep.subr.bf16.mxu0 0
      %617 = vmatpush2.bf16.msra.mxu0 0
      %618 = vmatprep.subr.bf16.mxu0 0
      %619 = vmatpush2.bf16.msra.mxu0 0
      %620 = vmatprep.mubr.bf16.mxu0 0
      %621 = vmatmul.mubr.bf16.gmra.mxu0 %v530
      %v622 = vpop.f32.mrf.mxu0
      %v623 = vadd.f32 %v570, %v622
      %v624 = vpop.f32.mrf.mxu0
      %v625 = vadd.f32 %v572, %v624
      %v626 = vpop.f32.mrf.mxu0
      %v627 = vadd.f32 %v574, %v626
      %v628 = vpop.f32.mrf.mxu0
      %v629 = vadd.f32 %v576, %v628
      %630 = vmatprep.mubr.bf16.mxu0 0
      %631 = vmatmul.mubr.bf16.gmra.mxu0 %v533
      %v632 = vpop.f32.mrf.mxu0
      %v633 = vadd.f32 %v580, %v632
      %v634 = vpop.f32.mrf.mxu0
      %v635 = vadd.f32 %v582, %v634
      %v636 = vpop.f32.mrf.mxu0
      %v637 = vadd.f32 %v584, %v636
      %v638 = vpop.f32.mrf.mxu0
      %v639 = vadd.f32 %v586, %v638
      %640 = vdwg.mxu0
      %v641 = vmax.f32 %v623, 0.0
      %v642 = vmax.f32 %v625, 0.0
      %v643 = vmax.f32 %v627, 0.0
      %v644 = vmax.f32 %v629, 0.0
      %v645 = vmax.f32 %v633, 0.0
      %v646 = vmax.f32 %v635, 0.0
      %v647 = vmax.f32 %v637, 0.0
      %v648 = vmax.f32 %v639, 0.0
      %v649 = vsel %vm255, %v641, 0.0
      %v650 = vsel %vm256, %v642, 0.0
      %v651 = vsel %vm255, %v643, 0.0
      %v652 = vsel %vm256, %v644, 0.0
      %v653 = vsel %vm255, %v645, 0.0
      %v654 = vsel %vm256, %v646, 0.0
      %v655 = vsel %vm255, %v647, 0.0
      %v656 = vsel %vm256, %v648, 0.0
      %v657 = vpack.c.bf16 %v651, %v649
      %v658 = vpack.c.bf16 %v652, %v650
      %v659 = vpack.c.bf16 %v655, %v653
      %v660 = vpack.c.bf16 %v656, %v654
      %v661 = vpack.c.bf16 %v643, %v641
      %v662 = vpack.c.bf16 %v644, %v642
      %v663 = vpack.c.bf16 %v647, %v645
      %v664 = vpack.c.bf16 %v648, %v646
      %v665 = vsel %vm253, %v641, 0.0
      %v666 = vsel %vm254, %v642, 0.0
      %v667 = vsel %vm253, %v643, 0.0
      %v668 = vsel %vm254, %v644, 0.0
      %v669 = vsel %vm253, %v645, 0.0
      %v670 = vsel %vm254, %v646, 0.0
      %v671 = vsel %vm253, %v647, 0.0
      %v672 = vsel %vm254, %v648, 0.0
      %v673 = vpack.c.bf16 %v667, %v665
      %v674 = vpack.c.bf16 %v668, %v666
      %v675 = vpack.c.bf16 %v671, %v669
      %v676 = vpack.c.bf16 %v672, %v670
      %681 = vrot.lane.b32.xlu0 %v657, 17
      %v682 = vpop.permute.xlu0 %681
      %683 = vrot.lane.b32.xlu0 %v658, 17
      %v684 = vpop.permute.xlu0 %683
      %685 = vrot.lane.b32.xlu0 %v659, 17
      %v686 = vpop.permute.xlu0 %685
      %687 = vrot.lane.b32.xlu0 %v660, 17
      %v688 = vpop.permute.xlu0 %687
      %v689 = vsel %vm305, %v682, %v684
      %v690 = vsel %vm305, %v686, %v688
      %v694 = vsel %vm310, 0, %v682
      %v697 = vsel %vm310, 0, %v686
      %703 = vrot.lane.b32.xlu0 %v661, 16
      %v704 = vpop.permute.xlu0 %703
      %705 = vrot.lane.b32.xlu0 %v662, 16
      %v706 = vpop.permute.xlu0 %705
      %707 = vrot.lane.b32.xlu0 %v663, 16
      %v708 = vpop.permute.xlu0 %707
      %709 = vrot.lane.b32.xlu0 %v664, 16
      %v710 = vpop.permute.xlu0 %709
      %v711 = vsel %vm330, %v704, %v706
      %v712 = vsel %vm330, %v708, %v710
      %v716 = vsel %vm335, 0, %v704
      %v719 = vsel %vm335, 0, %v708
      %725 = vrot.lane.b32.xlu0 %v673, 15
      %v726 = vpop.permute.xlu0 %725
      %727 = vrot.lane.b32.xlu0 %v674, 15
      %v728 = vpop.permute.xlu0 %727
      %729 = vrot.lane.b32.xlu0 %v675, 15
      %v730 = vpop.permute.xlu0 %729
      %731 = vrot.lane.b32.xlu0 %v676, 15
      %v732 = vpop.permute.xlu0 %731
      %v733 = vsel %vm354, %v726, %v728
      %v734 = vsel %vm354, %v730, %v732
      %v738 = vsel %vm359, 0, %v726
      %v741 = vsel %vm359, 0, %v730
      %743 = vrot.lane.b32.xlu0 %v657, 1
      %v744 = vpop.permute.xlu0 %743
      %745 = vrot.lane.b32.xlu0 %v658, 1
      %v746 = vpop.permute.xlu0 %745
      %747 = vrot.lane.b32.xlu0 %v659, 1
      %v748 = vpop.permute.xlu0 %747
      %749 = vrot.lane.b32.xlu0 %v660, 1
      %v750 = vpop.permute.xlu0 %749
      %v751 = vsel %vm374, %v744, %v746
      %v752 = vsel %vm374, %v748, %v750
      %v756 = vsel %vm379, 0, %v744
      %v759 = vsel %vm379, 0, %v748
      %761 = vrot.lane.b32.xlu0 %v673, 127
      %v762 = vpop.permute.xlu0 %761
      %763 = vrot.lane.b32.xlu0 %v674, 127
      %v764 = vpop.permute.xlu0 %763
      %765 = vrot.lane.b32.xlu0 %v675, 127
      %v766 = vpop.permute.xlu0 %765
      %767 = vrot.lane.b32.xlu0 %v676, 127
      %v768 = vpop.permute.xlu0 %767
      %v769 = vsel %vm394, %v762, %v764
      %v770 = vsel %vm394, %v766, %v768
      %v774 = vsel %vm399, %v764, 0
      %v777 = vsel %vm399, %v768, 0
      %779 = vrot.lane.b32.xlu0 %v657, 113
      %v780 = vpop.permute.xlu0 %779
      %781 = vrot.lane.b32.xlu0 %v658, 113
      %v782 = vpop.permute.xlu0 %781
      %783 = vrot.lane.b32.xlu0 %v659, 113
      %v784 = vpop.permute.xlu0 %783
      %785 = vrot.lane.b32.xlu0 %v660, 113
      %v786 = vpop.permute.xlu0 %785
      %v787 = vsel %vm414, %v780, %v782
      %v788 = vsel %vm414, %v784, %v786
      %v792 = vsel %vm419, %v782, 0
      %v795 = vsel %vm419, %v786, 0
      %797 = vrot.lane.b32.xlu0 %v661, 112
      %v798 = vpop.permute.xlu0 %797
      %799 = vrot.lane.b32.xlu0 %v662, 112
      %v800 = vpop.permute.xlu0 %799
      %801 = vrot.lane.b32.xlu0 %v663, 112
      %v802 = vpop.permute.xlu0 %801
      %803 = vrot.lane.b32.xlu0 %v664, 112
      %v804 = vpop.permute.xlu0 %803
      %v805 = vsel %vm434, %v798, %v800
      %v806 = vsel %vm434, %v802, %v804
      %v810 = vsel %vm439, %v800, 0
      %v813 = vsel %vm439, %v804, 0
      %815 = vrot.lane.b32.xlu0 %v673, 111
      %v816 = vpop.permute.xlu0 %815
      %817 = vrot.lane.b32.xlu0 %v674, 111
      %v818 = vpop.permute.xlu0 %817
      %819 = vrot.lane.b32.xlu0 %v675, 111
      %v820 = vpop.permute.xlu0 %819
      %821 = vrot.lane.b32.xlu0 %v676, 111
      %v822 = vpop.permute.xlu0 %821
      %v823 = vsel %vm454, %v816, %v818
      %v824 = vsel %vm454, %v820, %v822
      %v828 = vsel %vm459, %v818, 0
      %v831 = vsel %vm459, %v822, 0
      %v833 = vld [vmem:[%s2] sm:$0xff]
      %v834 = vld [vmem:[%s2 + $0x8] sm:$0xf]
      %v835 = vld [vmem:[%s2 + $0xc] sm:$0xff]
      %v836 = vld [vmem:[%s2 + $0x14] sm:$0xf]
      %v837 = vld [vmem:[%s2 + $0x18] sm:$0xff]
      %v838 = vld [vmem:[%s2 + $0x20] sm:$0xf]
      %v839 = vld [vmem:[%s2 + $0x24] sm:$0xff]
      %v840 = vld [vmem:[%s2 + $0x2c] sm:$0xf]
      %v841 = vld [vmem:[%s4] sm:$0xff]
      %v842 = vld [vmem:[%s4 + $0x8] sm:$0xff]
      %v843 = vld [vmem:[%s4 + $0x10] sm:$0xff]
      %v844 = vld [vmem:[%s4 + $0x18] sm:$0xff]
      %846 = vset.pattern.permute.xlu0 0
      %847 = vperm.xlu0 %846, %v841
      %v848 = vpop.permute.xlu0 %847
      %851 = vset.pattern.permute.xlu0 0
      %852 = vperm.xlu0 %851, %v842
      %v853 = vpop.permute.xlu0 %852
      %856 = vset.pattern.permute.xlu0 0
      %857 = vperm.xlu0 %856, %v843
      %v858 = vpop.permute.xlu0 %857
      %861 = vset.pattern.permute.xlu0 0
      %862 = vperm.xlu0 %861, %v844
      %v863 = vpop.permute.xlu0 %862
      %v873 = vunpack.c.l.b16 %v833
      %v874 = vunpack.c.h.b16 %v833
      %v875 = vunpack.c.l.b16 %v834
      %v876 = vunpack.c.l.b16 %v835
      %v877 = vunpack.c.h.b16 %v835
      %v878 = vunpack.c.l.b16 %v836
      %v879 = vunpack.c.l.b16 %v837
      %v880 = vunpack.c.h.b16 %v837
      %v881 = vunpack.c.l.b16 %v838
      %v882 = vunpack.c.l.b16 %v839
      %v883 = vunpack.c.h.b16 %v839
      %v884 = vunpack.c.l.b16 %v840
      %v885 = vpack.c.b16 %v876, %v873
      %v886 = vpack.c.b16 %v877, %v874
      %v887 = vpack.c.b16 %v878, %v875
      %v888 = vpack.c.b16 %v882, %v879
      %v889 = vpack.c.b16 %v883, %v880
      %v890 = vpack.c.b16 %v884, %v881
      %v896 = vsel %vm528, %v887, 0
      %v899 = vsel %vm528, %v890, 0
      %901 = vmatprep.subr.bf16.mxu0 %v752
      %902 = vmatpush1.bf16.msra.mxu0 %v759
      %903 = vmatprep.subr.bf16.mxu0 %v751
      %904 = vmatpush1.bf16.msra.mxu0 %v756
      %905 = vmatprep.subr.bf16.mxu0 %v734
      %906 = vmatpush1.bf16.msra.mxu0 %v741
      %907 = vmatprep.subr.bf16.mxu0 %v733
      %908 = vmatpush1.bf16.msra.mxu0 %v738
      %909 = vmatprep.subr.bf16.mxu0 %v712
      %910 = vmatpush1.bf16.msra.mxu0 %v719
      %911 = vmatprep.subr.bf16.mxu0 %v711
      %912 = vmatpush1.bf16.msra.mxu0 %v716
      %913 = vmatprep.subr.bf16.mxu0 %v690
      %914 = vmatpush1.bf16.msra.mxu0 %v697
      %915 = vmatprep.subr.bf16.mxu0 %v689
      %916 = vmatpush1.bf16.msra.mxu0 %v694
      %917 = vmatprep.subr.bf16.mxu0 %v813
      %918 = vmatpush2.bf16.msra.mxu0 %v806
      %919 = vmatprep.subr.bf16.mxu0 %v810
      %920 = vmatpush2.bf16.msra.mxu0 %v805
      %921 = vmatprep.subr.bf16.mxu0 %v795
      %922 = vmatpush2.bf16.msra.mxu0 %v788
      %923 = vmatprep.subr.bf16.mxu0 %v792
      %924 = vmatpush2.bf16.msra.mxu0 %v787
      %925 = vmatprep.subr.bf16.mxu0 %v777
      %926 = vmatpush2.bf16.msra.mxu0 %v770
      %927 = vmatprep.subr.bf16.mxu0 %v774
      %928 = vmatpush2.bf16.msra.mxu0 %v769
      %929 = vmatprep.subr.bf16.mxu0 %v664
      %930 = vmatpush2.bf16.msra.mxu0 %v663
      %931 = vmatprep.subr.bf16.mxu0 %v662
      %932 = vmatpush2.bf16.msra.mxu0 %v661
      %933 = vmatprep.mubr.bf16.mxu0 %v886
      %934 = vmatmul.mubr.bf16.gmra.mxu0 %v885
      %v935 = vpop.f32.mrf.mxu0
      %v936 = vadd.f32 %v848, %v935
      %v937 = vpop.f32.mrf.mxu0
      %v938 = vadd.f32 %v848, %v937
      %v939 = vpop.f32.mrf.mxu0
      %v940 = vadd.f32 %v853, %v939
      %v941 = vpop.f32.mrf.mxu0
      %v942 = vadd.f32 %v853, %v941
      %943 = vmatprep.mubr.bf16.mxu0 %v889
      %944 = vmatmul.mubr.bf16.gmra.mxu0 %v888
      %v945 = vpop.f32.mrf.mxu0
      %v946 = vadd.f32 %v858, %v945
      %v947 = vpop.f32.mrf.mxu0
      %v948 = vadd.f32 %v858, %v947
      %v949 = vpop.f32.mrf.mxu0
      %v950 = vadd.f32 %v863, %v949
      %v951 = vpop.f32.mrf.mxu0
      %v952 = vadd.f32 %v863, %v951
      %953 = vdwg.mxu0
      %954 = vmatprep.subr.bf16.mxu0 0
      %955 = vmatpush1.bf16.msra.mxu0 0
      %956 = vmatprep.subr.bf16.mxu0 0
      %957 = vmatpush1.bf16.msra.mxu0 0
      %958 = vmatprep.subr.bf16.mxu0 0
      %959 = vmatpush1.bf16.msra.mxu0 0
      %960 = vmatprep.subr.bf16.mxu0 0
      %961 = vmatpush1.bf16.msra.mxu0 0
      %962 = vmatprep.subr.bf16.mxu0 0
      %963 = vmatpush1.bf16.msra.mxu0 0
      %964 = vmatprep.subr.bf16.mxu0 0
      %965 = vmatpush1.bf16.msra.mxu0 0
      %966 = vmatprep.subr.bf16.mxu0 %v831
      %967 = vmatpush1.bf16.msra.mxu0 %v824
      %968 = vmatprep.subr.bf16.mxu0 %v828
      %969 = vmatpush1.bf16.msra.mxu0 %v823
      %970 = vmatprep.subr.bf16.mxu0 0
      %971 = vmatpush2.bf16.msra.mxu0 0
      %972 = vmatprep.subr.bf16.mxu0 0
      %973 = vmatpush2.bf16.msra.mxu0 0
      %974 = vmatprep.subr.bf16.mxu0 0
      %975 = vmatpush2.bf16.msra.mxu0 0
      %976 = vmatprep.subr.bf16.mxu0 0
      %977 = vmatpush2.bf16.msra.mxu0 0
      %978 = vmatprep.subr.bf16.mxu0 0
      %979 = vmatpush2.bf16.msra.mxu0 0
      %980 = vmatprep.subr.bf16.mxu0 0
      %981 = vmatpush2.bf16.msra.mxu0 0
      %982 = vmatprep.subr.bf16.mxu0 0
      %983 = vmatpush2.bf16.msra.mxu0 0
      %984 = vmatprep.subr.bf16.mxu0 0
      %985 = vmatpush2.bf16.msra.mxu0 0
      %986 = vmatprep.mubr.bf16.mxu0 0
      %987 = vmatmul.mubr.bf16.gmra.mxu0 %v896
      %v988 = vpop.f32.mrf.mxu0
      %v989 = vadd.f32 %v936, %v988
      %v990 = vpop.f32.mrf.mxu0
      %v991 = vadd.f32 %v938, %v990
      %v992 = vpop.f32.mrf.mxu0
      %v993 = vadd.f32 %v940, %v992
      %v994 = vpop.f32.mrf.mxu0
      %v995 = vadd.f32 %v942, %v994
      %996 = vmatprep.mubr.bf16.mxu0 0
      %997 = vmatmul.mubr.bf16.gmra.mxu0 %v899
      %v998 = vpop.f32.mrf.mxu0
      %v999 = vadd.f32 %v946, %v998
      %v1000 = vpop.f32.mrf.mxu0
      %v1001 = vadd.f32 %v948, %v1000
      %v1002 = vpop.f32.mrf.mxu0
      %v1003 = vadd.f32 %v950, %v1002
      %v1004 = vpop.f32.mrf.mxu0
      %v1005 = vadd.f32 %v952, %v1004
      %1006 = vdwg.mxu0
      %v1007 = vadd.f32 %v989, %v257
      %v1008 = vadd.f32 %v991, %v258
      %v1009 = vadd.f32 %v993, %v259
      %v1010 = vadd.f32 %v995, %v260
      %v1011 = vadd.f32 %v999, %v261
      %v1012 = vadd.f32 %v1001, %v262
      %v1013 = vadd.f32 %v1003, %v263
      %v1014 = vadd.f32 %v1005, %v264
      %v1015 = vmax.f32 %v1007, 0.0
      %v1016 = vmax.f32 %v1008, 0.0
      %v1017 = vmax.f32 %v1009, 0.0
      %v1018 = vmax.f32 %v1010, 0.0
      %v1019 = vmax.f32 %v1011, 0.0
      %v1020 = vmax.f32 %v1012, 0.0
      %v1021 = vmax.f32 %v1013, 0.0
      %v1022 = vmax.f32 %v1014, 0.0
      %1023 = vst [vmem:[%s224] sm:$0xff] %v1015
      %1024 = vst [vmem:[%s224 + $0x8] sm:$0xff] %v1016
      %1025 = vst [vmem:[%s224 + $0x10] sm:$0xff] %v1017
      %1026 = vst [vmem:[%s224 + $0x18] sm:$0xff] %v1018
      %1027 = vst [vmem:[%s224 + $0x20] sm:$0xff] %v1019
      %1028 = vst [vmem:[%s224 + $0x28] sm:$0xff] %v1020
      %1029 = vst [vmem:[%s224 + $0x30] sm:$0xff] %v1021
      %1030 = vst [vmem:[%s224 + $0x38] sm:$0xff] %v1022
      %p1031 = scmp.lt.s32.totalorder %s16, 1
      %s1032 = scalar_select %p1031, %s16, 1
      %s1033 = smul.addr %s1032, 8
      %s1034 = smul.addr %s1033, 8
      %s1035 = scalar_lea.vmem %s5, %s1034
      // Predicated region
      $region41: #{basic_block_forward.1} parent=39 // pred_check
        %p1036 = pneg %p144
      $region42: #{basic_block_forward.1} parent=39 // pred_check_branch
        %1038 = sbr.rel (%p1036) target = $region44
      $region43: #{basic_block_forward.1} parent=39 // pred_region
        _
      $region44: #{basic_block_forward.1} parent=39 // pred_fallthru
        _
    $region40: #{basic_block_forward.1} parent=5 // pred_fallthru
      _
    %p1039 = scmp.le.s32.totalorder 2, %s11
    // Predicated region
    $region45: #{basic_block_forward.1} parent=5 // pred_check
      %p1040 = pneg %p1039
    $region46: #{basic_block_forward.1} parent=5 // pred_check_branch
      %1042 = sbr.rel (%p1040) target = $region48
    $region47: #{basic_block_forward.1} parent=5 // pred_region
      %s1043 = ssub.s32 %s11, 2
      // Predicated region
      $region49: #{basic_block_forward.1} parent=47 // pred_check
        %p1044 = pneg %p150
      $region50: #{basic_block_forward.1} parent=47 // pred_check_branch
        %1046 = sbr.rel (%p1044) target = $region52
      $region51: #{basic_block_forward.1} parent=47 // pred_region
        %p1047 = scmp.lt.s32.totalorder %s17, 1
        %s1048 = scalar_select %p1047, %s17, 1
        %s1049 = smul.addr %s1048, 8
        %s1050 = smul.addr %s1049, 8
        %s1051 = scalar_lea.vmem %s5, %s1050
      $region52: #{basic_block_forward.1} parent=47 // pred_fallthru
        _
    $region48: #{basic_block_forward.1} parent=5 // pred_fallthru
      _
  $region6: #{basic_block_forward.1} parent=0 // loop_footer
    %s15 = sadd.s32 1, %s11
  $region7: #{basic_block_forward.1} parent=0 // loop_footer_branch
    %10 = sbr.rel target = $region3
  $region8: #{basic_block_forward.1} parent=0 // loop_exit
    _

</llo_original>
